<compile_context>
chip_gen: v7x
topology: tpu7x:2x2x1
jax: 0.10.0
libtpu: 0.0.40
codegen_flags: <defaults>
</compile_context>

<pallas_src>
import functools
import math

import jax
import jax.numpy as jnp
from jax.experimental import pallas as pl
from jax.experimental.pallas import tpu as pltpu


_INV_SQRT2 = 1.0 / math.sqrt(2.0)
_TANH_C = math.sqrt(2.0 / math.pi)


def _gelu(v, exact):
    if exact:
        # exact (erf-based) GELU, matching torch.nn.GELU() default
        return 0.5 * v * (1.0 + jax.lax.erf(v * _INV_SQRT2))
    # tanh-approximate GELU: routes through the EUP slot (VALU relief);
    # deviates O(1e-3) from the exact-erf form.
    return 0.5 * v * (1.0 + jnp.tanh(_TANH_C * (v + 0.044715 * v * v * v)))


def _img_res_kernel(x_ref, w1_ref, b1_ref, w2_ref, b2_ref,
                    w3_ref, b3_ref, w4_ref, b4_ref, out_ref,
                    *, d, exact_gelu):
    # x_ref: (TN, 5d) flattened frames in the caller's dtype.
    # Residual (frame 0) = first d columns, kept exact in f32.
    f0 = x_ref[:, :d].astype(jnp.float32)
    xb = x_ref[...].astype(jnp.bfloat16)

    # lineari1: frame-diff structure already folded into w1 (telescoped) ->
    # single K=5d bf16 MXU pass with f32 accumulation.
    h = _gelu(jnp.dot(xb, w1_ref[...], preferred_element_type=jnp.float32)
              + b1_ref[...], exact_gelu)
    # TODO(synk): nn.Dropout(p=0.01) skipped — identity at inference (eval mode).
    h = _gelu(jnp.dot(h.astype(jnp.bfloat16), w2_ref[...],
                      preferred_element_type=jnp.float32) + b2_ref[...], exact_gelu)
    h = _gelu(jnp.dot(h.astype(jnp.bfloat16), w3_ref[...],
                      preferred_element_type=jnp.float32) + b3_ref[...], exact_gelu)
    h = _gelu(jnp.dot(h.astype(jnp.bfloat16), w4_ref[...],
                      preferred_element_type=jnp.float32) + b4_ref[...], exact_gelu)

    # residual with frame 0 + per-row L2 normalization (rsqrt -> EUP slot)
    y = f0 + h
    inv_norm = jax.lax.rsqrt(jnp.sum(y * y, axis=-1, keepdims=True))
    out_ref[...] = (y * inv_norm).astype(out_ref.dtype)


def prepare_params(raw, *, weight_dtype=jnp.bfloat16):
    """One-time layout/precision prep.

    Transposes weights (kernel computes x @ W^T), folds the frame-difference
    structure into the first weight matrix (telescoping, done in f32), and
    stores matmul weights in bf16 (biases stay f32).
    """
    f32 = jnp.float32
    w1t = raw["lineari1_w"].T.astype(f32)                # (4d, 6d)
    d = w1t.shape[0] // 4
    W = [w1t[j * d:(j + 1) * d, :] for j in range(4)]    # each (d, 6d)
    # diffs = [f2-f1, f3-f2, f4-f3, f0-f4]:
    #   concat(diffs) @ [W0;W1;W2;W3] == concat(f0..f4) @ [W3; -W0; W0-W1; W1-W2; W2-W3]
    w1f = jnp.concatenate(
        [W[3], -W[0], W[0] - W[1], W[1] - W[2], W[2] - W[3]], axis=0)  # (5d, 6d)
    return {
        "dim": d,
        "w1f": w1f.astype(weight_dtype),                               # (5d, 6d)
        "b1": raw["lineari1_b"].reshape(1, -1).astype(f32),
        "w2t": raw["lineari2_w"].T.astype(weight_dtype),               # (6d, 3d)
        "b2": raw["lineari2_b"].reshape(1, -1).astype(f32),
        "w3t": raw["lineari3_w"].T.astype(weight_dtype),               # (3d, d)
        "b3": raw["lineari3_b"].reshape(1, -1).astype(f32),
        "w4t": raw["lineari4_w"].T.astype(weight_dtype),               # (d, d)
        "b4": raw["lineari4_b"].reshape(1, -1).astype(f32),
    }


def img_res_forward(ifeat, prepped, *, tile_n=None, exact_gelu=False):
    """ifeat: (N, fnum=5, dim) in any float dtype. Returns L2-normalized (N, dim) f32."""
    n, fnum, d = ifeat.shape
    assert fnum == 5, "module requires fnum == 5 ((fnum-1)*dim == 4*dim)"
    assert d == prepped["dim"]

    # Free (contiguous) layout change in the wrapper: lane-dense (N, 5d) slab.
    # No dtype cast here — the kernel consumes the caller's dtype directly.
    x = ifeat.reshape(n, fnum * d)

    if tile_n is None:
        # Sweep 512 -> 1024/2048 on v6e (with a raised vmem limit) for large N.
        tile_n = n if n <= 512 else 512
    grid = (pl.cdiv(n, tile_n),)

    params = (prepped["w1f"], prepped["b1"], prepped["w2t"], prepped["b2"],
              prepped["w3t"], prepped["b3"], prepped["w4t"], prepped["b4"])

    def resident(a):
        # Full-array block with constant index_map -> fetched once, stays resident.
        # TODO(synk): on v7x with large dim, single-buffer these weight blocks
        # (pipeline_mode=pl.Buffered(1)) to respect the 64 MiB/TC VMEM budget.
        return pl.BlockSpec(a.shape, lambda i: (0, 0))

    in_specs = [pl.BlockSpec((tile_n, fnum * d), lambda i: (i, 0))]
    in_specs += [resident(a) for a in params]
    out_specs = pl.BlockSpec((tile_n, d), lambda i: (i, 0))

    kernel = functools.partial(_img_res_kernel, d=d, exact_gelu=exact_gelu)
    return pl.pallas_call(
        kernel,
        out_shape=jax.ShapeDtypeStruct((n, d), jnp.float32),
        grid=grid,
        in_specs=in_specs,
        out_specs=out_specs,
        compiler_params=pltpu.CompilerParams(
            dimension_semantics=("parallel",),
            vmem_limit_bytes=32 * 1024 * 1024),
    )(x, *params)


def init_raw_params(key, dim):
    """Deterministic synthetic parameters (shapes match the nn.Module)."""
    ks = jax.random.split(key, 8)
    s = 0.05
    return {
        "lineari1_w": jax.random.normal(ks[0], (6 * dim, 4 * dim), jnp.float32) * s,
        "lineari1_b": jax.random.normal(ks[1], (6 * dim,), jnp.float32) * s,
        "lineari2_w": jax.random.normal(ks[2], (3 * dim, 6 * dim), jnp.float32) * s,
        "lineari2_b": jax.random.normal(ks[3], (3 * dim,), jnp.float32) * s,
        "lineari3_w": jax.random.normal(ks[4], (dim, 3 * dim), jnp.float32) * s,
        "lineari3_b": jax.random.normal(ks[5], (dim,), jnp.float32) * s,
        "lineari4_w": jax.random.normal(ks[6], (dim, dim), jnp.float32) * s,
        "lineari4_b": jax.random.normal(ks[7], (dim,), jnp.float32) * s,
    }


def _reference(ifeat, raw):
    """Pure-JAX f32 reference mirroring the PyTorch forward exactly (erf GELU)."""
    n, fnum, d = ifeat.shape
    diffs = [ifeat[:, i, :] - ifeat[:, i - 1, :] for i in range(2, fnum)]
    diffs.append(ifeat[:, 0, :] - ifeat[:, -1, :])
    x = jnp.concatenate(diffs, axis=-1)                    # (N, 4d)

    def gelu(v):
        return 0.5 * v * (1.0 + jax.lax.erf(v / math.sqrt(2.0)))

    x = gelu(x @ raw["lineari1_w"].T + raw["lineari1_b"])
    x = gelu(x @ raw["lineari2_w"].T + raw["lineari2_b"])
    x = gelu(x @ raw["lineari3_w"].T + raw["lineari3_b"])
    x = gelu(x @ raw["lineari4_w"].T + raw["lineari4_b"])
    y = ifeat[:, 0, :] + x
    return y / jnp.linalg.norm(y, axis=-1, keepdims=True)


if __name__ == "__main__":
    dim = 32
    fnum = 5          # fixed by the module: Linear(dim*4, ...) consumes (fnum-1)*dim diffs
    n_imgs = 8

    key = jax.random.PRNGKey(0)
    k_x, k_p = jax.random.split(key)
    ifeat = jax.random.normal(k_x, (n_imgs, fnum, dim), jnp.float32)

    raw = init_raw_params(k_p, dim)
    prepped = prepare_params(raw)

    out = jax.block_until_ready(img_res_forward(ifeat, prepped))

    ref = _reference(ifeat, raw)
    assert out.shape == (n_imgs, dim)
    # bf16 MXU operands + tanh-approx GELU vs exact-erf f32 reference -> O(1e-3) drift.
    assert jnp.allclose(out, ref, rtol=1e-2, atol=1e-2), "mismatch vs reference"

    print("KERNEL_OK")
</pallas_src>

<mosaic_0001>
module attributes {stable_mosaic.version = 11 : i64} {
  func.func @_img_res_kernel(%arg0: i32, %arg1: memref<8x160xf32, #tpu.memory_space<vmem>>, %arg2: memref<160x192xbf16, #tpu.memory_space<vmem>>, %arg3: memref<1x192xf32, #tpu.memory_space<vmem>>, %arg4: memref<192x96xbf16, #tpu.memory_space<vmem>>, %arg5: memref<1x96xf32, #tpu.memory_space<vmem>>, %arg6: memref<96x32xbf16, #tpu.memory_space<vmem>>, %arg7: memref<1x32xf32, #tpu.memory_space<vmem>>, %arg8: memref<32x32xbf16, #tpu.memory_space<vmem>>, %arg9: memref<1x32xf32, #tpu.memory_space<vmem>>, %arg10: memref<8x32xf32, #tpu.memory_space<vmem>>) attributes {dimension_semantics = [#tpu.dimension_semantics<parallel>], iteration_bounds = array<i64: 1>, scalar_prefetch = 0 : i64, scratch_operands = 0 : i64, tpu.core_type = #tpu.core_type<tc>, window_params = [{transform_indices = @transform_0, window_bounds = array<i64: 8, 160>}, {pipeline_mode = #tpu.pipeline_mode<synchronous>, transform_indices = @transform_1, window_bounds = array<i64: 160, 192>}, {pipeline_mode = #tpu.pipeline_mode<synchronous>, transform_indices = @transform_2, window_bounds = array<i64: 1, 192>}, {pipeline_mode = #tpu.pipeline_mode<synchronous>, transform_indices = @transform_3, window_bounds = array<i64: 192, 96>}, {pipeline_mode = #tpu.pipeline_mode<synchronous>, transform_indices = @transform_4, window_bounds = array<i64: 1, 96>}, {pipeline_mode = #tpu.pipeline_mode<synchronous>, transform_indices = @transform_5, window_bounds = array<i64: 96, 32>}, {pipeline_mode = #tpu.pipeline_mode<synchronous>, transform_indices = @transform_6, window_bounds = array<i64: 1, 32>}, {pipeline_mode = #tpu.pipeline_mode<synchronous>, transform_indices = @transform_7, window_bounds = array<i64: 32, 32>}, {pipeline_mode = #tpu.pipeline_mode<synchronous>, transform_indices = @transform_8, window_bounds = array<i64: 1, 32>}, {transform_indices = @transform_9, window_bounds = array<i64: 8, 32>}]} {
    %c0 = arith.constant 0 : index
    %c0_0 = arith.constant 0 : index
    %0 = vector.load %arg1[%c0, %c0_0] : memref<8x160xf32, #tpu.memory_space<vmem>>, vector<8x32xf32>
    %c0_1 = arith.constant 0 : index
    %c0_2 = arith.constant 0 : index
    %1 = vector.load %arg1[%c0_1, %c0_2] : memref<8x160xf32, #tpu.memory_space<vmem>>, vector<8x160xf32>
    %2 = arith.truncf %1 : vector<8x160xf32> to vector<8x160xbf16>
    %c0_3 = arith.constant 0 : index
    %c0_4 = arith.constant 0 : index
    %3 = vector.load %arg2[%c0_3, %c0_4] : memref<160x192xbf16, #tpu.memory_space<vmem>>, vector<160x192xbf16>
    %cst = arith.constant dense<0.000000e+00> : vector<8x192xf32>
    %4 = tpu.matmul %2, %3, %cst {dimension_numbers = #tpu.dot_dimension_numbers<[1], [0], [0], [1], [0, 0, 1, 1], [], []>} : vector<8x160xbf16>, vector<160x192xbf16>, vector<8x192xf32> -> vector<8x192xf32>
    %c0_5 = arith.constant 0 : index
    %c0_6 = arith.constant 0 : index
    %5 = vector.load %arg3[%c0_5, %c0_6] : memref<1x192xf32, #tpu.memory_space<vmem>>, vector<1x192xf32>
    %6 = vector.broadcast %5 : vector<1x192xf32> to vector<8x192xf32>
    %7 = arith.addf %4, %6 : vector<8x192xf32>
    %cst_7 = arith.constant 5.000000e-01 : f32
    %8 = vector.broadcast %cst_7 : f32 to vector<8x192xf32>
    %9 = arith.mulf %8, %7 : vector<8x192xf32>
    %cst_8 = arith.constant 4.471500e-02 : f32
    %10 = vector.broadcast %cst_8 : f32 to vector<8x192xf32>
    %11 = arith.mulf %10, %7 : vector<8x192xf32>
    %12 = arith.mulf %11, %7 : vector<8x192xf32>
    %13 = arith.mulf %12, %7 : vector<8x192xf32>
    %14 = arith.addf %7, %13 : vector<8x192xf32>
    %cst_9 = arith.constant 0.797884583 : f32
    %15 = vector.broadcast %cst_9 : f32 to vector<8x192xf32>
    %16 = arith.mulf %15, %14 : vector<8x192xf32>
    %17 = math.tanh %16 : vector<8x192xf32>
    %cst_10 = arith.constant 1.000000e+00 : f32
    %18 = vector.broadcast %cst_10 : f32 to vector<8x192xf32>
    %19 = arith.addf %18, %17 : vector<8x192xf32>
    %20 = arith.mulf %9, %19 : vector<8x192xf32>
    %21 = arith.truncf %20 : vector<8x192xf32> to vector<8x192xbf16>
    %c0_11 = arith.constant 0 : index
    %c0_12 = arith.constant 0 : index
    %22 = vector.load %arg4[%c0_11, %c0_12] : memref<192x96xbf16, #tpu.memory_space<vmem>>, vector<192x96xbf16>
    %cst_13 = arith.constant dense<0.000000e+00> : vector<8x96xf32>
    %23 = tpu.matmul %21, %22, %cst_13 {dimension_numbers = #tpu.dot_dimension_numbers<[1], [0], [0], [1], [0, 0, 1, 1], [], []>} : vector<8x192xbf16>, vector<192x96xbf16>, vector<8x96xf32> -> vector<8x96xf32>
    %c0_14 = arith.constant 0 : index
    %c0_15 = arith.constant 0 : index
    %24 = vector.load %arg5[%c0_14, %c0_15] : memref<1x96xf32, #tpu.memory_space<vmem>>, vector<1x96xf32>
    %25 = vector.broadcast %24 : vector<1x96xf32> to vector<8x96xf32>
    %26 = arith.addf %23, %25 : vector<8x96xf32>
    %cst_16 = arith.constant 5.000000e-01 : f32
    %27 = vector.broadcast %cst_16 : f32 to vector<8x96xf32>
    %28 = arith.mulf %27, %26 : vector<8x96xf32>
    %cst_17 = arith.constant 4.471500e-02 : f32
    %29 = vector.broadcast %cst_17 : f32 to vector<8x96xf32>
    %30 = arith.mulf %29, %26 : vector<8x96xf32>
    %31 = arith.mulf %30, %26 : vector<8x96xf32>
    %32 = arith.mulf %31, %26 : vector<8x96xf32>
    %33 = arith.addf %26, %32 : vector<8x96xf32>
    %cst_18 = arith.constant 0.797884583 : f32
    %34 = vector.broadcast %cst_18 : f32 to vector<8x96xf32>
    %35 = arith.mulf %34, %33 : vector<8x96xf32>
    %36 = math.tanh %35 : vector<8x96xf32>
    %cst_19 = arith.constant 1.000000e+00 : f32
    %37 = vector.broadcast %cst_19 : f32 to vector<8x96xf32>
    %38 = arith.addf %37, %36 : vector<8x96xf32>
    %39 = arith.mulf %28, %38 : vector<8x96xf32>
    %40 = arith.truncf %39 : vector<8x96xf32> to vector<8x96xbf16>
    %c0_20 = arith.constant 0 : index
    %c0_21 = arith.constant 0 : index
    %41 = vector.load %arg6[%c0_20, %c0_21] : memref<96x32xbf16, #tpu.memory_space<vmem>>, vector<96x32xbf16>
    %cst_22 = arith.constant dense<0.000000e+00> : vector<8x32xf32>
    %42 = tpu.matmul %40, %41, %cst_22 {dimension_numbers = #tpu.dot_dimension_numbers<[1], [0], [0], [1], [0, 0, 1, 1], [], []>} : vector<8x96xbf16>, vector<96x32xbf16>, vector<8x32xf32> -> vector<8x32xf32>
    %c0_23 = arith.constant 0 : index
    %c0_24 = arith.constant 0 : index
    %43 = vector.load %arg7[%c0_23, %c0_24] : memref<1x32xf32, #tpu.memory_space<vmem>>, vector<1x32xf32>
    %44 = vector.broadcast %43 : vector<1x32xf32> to vector<8x32xf32>
    %45 = arith.addf %42, %44 : vector<8x32xf32>
    %cst_25 = arith.constant 5.000000e-01 : f32
    %46 = vector.broadcast %cst_25 : f32 to vector<8x32xf32>
    %47 = arith.mulf %46, %45 : vector<8x32xf32>
    %cst_26 = arith.constant 4.471500e-02 : f32
    %48 = vector.broadcast %cst_26 : f32 to vector<8x32xf32>
    %49 = arith.mulf %48, %45 : vector<8x32xf32>
    %50 = arith.mulf %49, %45 : vector<8x32xf32>
    %51 = arith.mulf %50, %45 : vector<8x32xf32>
    %52 = arith.addf %45, %51 : vector<8x32xf32>
    %cst_27 = arith.constant 0.797884583 : f32
    %53 = vector.broadcast %cst_27 : f32 to vector<8x32xf32>
    %54 = arith.mulf %53, %52 : vector<8x32xf32>
    %55 = math.tanh %54 : vector<8x32xf32>
    %cst_28 = arith.constant 1.000000e+00 : f32
    %56 = vector.broadcast %cst_28 : f32 to vector<8x32xf32>
    %57 = arith.addf %56, %55 : vector<8x32xf32>
    %58 = arith.mulf %47, %57 : vector<8x32xf32>
    %59 = arith.truncf %58 : vector<8x32xf32> to vector<8x32xbf16>
    %c0_29 = arith.constant 0 : index
    %c0_30 = arith.constant 0 : index
    %60 = vector.load %arg8[%c0_29, %c0_30] : memref<32x32xbf16, #tpu.memory_space<vmem>>, vector<32x32xbf16>
    %cst_31 = arith.constant dense<0.000000e+00> : vector<8x32xf32>
    %61 = tpu.matmul %59, %60, %cst_31 {dimension_numbers = #tpu.dot_dimension_numbers<[1], [0], [0], [1], [0, 0, 1, 1], [], []>} : vector<8x32xbf16>, vector<32x32xbf16>, vector<8x32xf32> -> vector<8x32xf32>
    %c0_32 = arith.constant 0 : index
    %c0_33 = arith.constant 0 : index
    %62 = vector.load %arg9[%c0_32, %c0_33] : memref<1x32xf32, #tpu.memory_space<vmem>>, vector<1x32xf32>
    %63 = vector.broadcast %62 : vector<1x32xf32> to vector<8x32xf32>
    %64 = arith.addf %61, %63 : vector<8x32xf32>
    %cst_34 = arith.constant 5.000000e-01 : f32
    %65 = vector.broadcast %cst_34 : f32 to vector<8x32xf32>
    %66 = arith.mulf %65, %64 : vector<8x32xf32>
    %cst_35 = arith.constant 4.471500e-02 : f32
    %67 = vector.broadcast %cst_35 : f32 to vector<8x32xf32>
    %68 = arith.mulf %67, %64 : vector<8x32xf32>
    %69 = arith.mulf %68, %64 : vector<8x32xf32>
    %70 = arith.mulf %69, %64 : vector<8x32xf32>
    %71 = arith.addf %64, %70 : vector<8x32xf32>
    %cst_36 = arith.constant 0.797884583 : f32
    %72 = vector.broadcast %cst_36 : f32 to vector<8x32xf32>
    %73 = arith.mulf %72, %71 : vector<8x32xf32>
    %74 = math.tanh %73 : vector<8x32xf32>
    %cst_37 = arith.constant 1.000000e+00 : f32
    %75 = vector.broadcast %cst_37 : f32 to vector<8x32xf32>
    %76 = arith.addf %75, %74 : vector<8x32xf32>
    %77 = arith.mulf %66, %76 : vector<8x32xf32>
    %78 = arith.addf %0, %77 : vector<8x32xf32>
    %79 = arith.mulf %78, %78 : vector<8x32xf32>
    %cst_38 = arith.constant dense<0.000000e+00> : vector<8xf32>
    %80 = vector.multi_reduction <add>, %79, %cst_38 [1] : vector<8x32xf32> to vector<8xf32>
    %81 = vector.shape_cast %80 : vector<8xf32> to vector<8x1xf32>
    %82 = math.rsqrt %81 : vector<8x1xf32>
    %83 = vector.broadcast %82 : vector<8x1xf32> to vector<8x32xf32>
    %84 = arith.mulf %78, %83 : vector<8x32xf32>
    %c0_39 = arith.constant 0 : index
    %c0_40 = arith.constant 0 : index
    %85 = vector.load %arg10[%c0_39, %c0_40] : memref<8x32xf32, #tpu.memory_space<vmem>>, vector<8x32xf32>
    tpu.vector_store %arg10[%c0_39, %c0_40], %84 {strides = array<i32>} : memref<8x32xf32, #tpu.memory_space<vmem>>, vector<8x32xf32>,
    return
  }
  func.func @transform_0(%arg0: i32) -> (i32, i32) {
    %c0_i32 = arith.constant 0 : i32
    %c0_i32_0 = arith.constant 0 : i32
    return %arg0, %c0_i32 : i32, i32
  }
  func.func @transform_1(%arg0: i32) -> (i32, i32) {
    %c0_i32 = arith.constant 0 : i32
    %c0_i32_0 = arith.constant 0 : i32
    %c0_i32_1 = arith.constant 0 : i32
    return %c0_i32, %c0_i32_0 : i32, i32
  }
  func.func @transform_2(%arg0: i32) -> (i32, i32) {
    %c0_i32 = arith.constant 0 : i32
    %c0_i32_0 = arith.constant 0 : i32
    %c0_i32_1 = arith.constant 0 : i32
    return %c0_i32, %c0_i32_0 : i32, i32
  }
  func.func @transform_3(%arg0: i32) -> (i32, i32) {
    %c0_i32 = arith.constant 0 : i32
    %c0_i32_0 = arith.constant 0 : i32
    %c0_i32_1 = arith.constant 0 : i32
    return %c0_i32, %c0_i32_0 : i32, i32
  }
  func.func @transform_4(%arg0: i32) -> (i32, i32) {
    %c0_i32 = arith.constant 0 : i32
    %c0_i32_0 = arith.constant 0 : i32
    %c0_i32_1 = arith.constant 0 : i32
    return %c0_i32, %c0_i32_0 : i32, i32
  }
  func.func @transform_5(%arg0: i32) -> (i32, i32) {
    %c0_i32 = arith.constant 0 : i32
    %c0_i32_0 = arith.constant 0 : i32
    %c0_i32_1 = arith.constant 0 : i32
    return %c0_i32, %c0_i32_0 : i32, i32
  }
  func.func @transform_6(%arg0: i32) -> (i32, i32) {
    %c0_i32 = arith.constant 0 : i32
    %c0_i32_0 = arith.constant 0 : i32
    %c0_i32_1 = arith.constant 0 : i32
    return %c0_i32, %c0_i32_0 : i32, i32
  }
  func.func @transform_7(%arg0: i32) -> (i32, i32) {
    %c0_i32 = arith.constant 0 : i32
    %c0_i32_0 = arith.constant 0 : i32
    %c0_i32_1 = arith.constant 0 : i32
    return %c0_i32, %c0_i32_0 : i32, i32
  }
  func.func @transform_8(%arg0: i32) -> (i32, i32) {
    %c0_i32 = arith.constant 0 : i32
    %c0_i32_0 = arith.constant 0 : i32
    %c0_i32_1 = arith.constant 0 : i32
    return %c0_i32, %c0_i32_0 : i32, i32
  }
  func.func @transform_9(%arg0: i32) -> (i32, i32) {
    %c0_i32 = arith.constant 0 : i32
    %c0_i32_0 = arith.constant 0 : i32
    return %arg0, %c0_i32 : i32, i32
  }
}

</mosaic_0001>

<llo_original>
// kernel: tpu_custom_call.1
$region0: #{tpu_custom_call.1}
  #allocation0 [shape = 'u32[]', space=smem, size = 0x4, offset = 0x4, fixed_abs, tag = 'smem constant byte address 0x4 - core index']
  #allocation1 [shape = 'u32[144,128]{1,0:T(1,128)}', space=vmem, size = 0x12000, scoped, tag = 'internal scratch']
  %s0 = inlined_call_operand.vmem [shape: f32[8,160], index: 0, kind: input, shape index: {}]
  %s1 = inlined_call_operand.hbm [shape: bf16[160,192], index: 1, kind: input, shape index: {}]
  %s2 = inlined_call_operand.vmem [shape: f32[1,192], index: 2, kind: input, shape index: {}]
  %s3 = inlined_call_operand.hbm [shape: bf16[192,96], index: 3, kind: input, shape index: {}]
  %s4 = inlined_call_operand.vmem [shape: f32[1,96], index: 4, kind: input, shape index: {}]
  %s5 = inlined_call_operand.vmem [shape: bf16[96,32], index: 5, kind: input, shape index: {}]
  %s6 = inlined_call_operand.vmem [shape: f32[1,32], index: 6, kind: input, shape index: {}]
  %s7 = inlined_call_operand.vmem [shape: bf16[32,32], index: 7, kind: input, shape index: {}]
  %s8 = inlined_call_operand.vmem [shape: f32[1,32], index: 8, kind: input, shape index: {}]
  %s9 = inlined_call_operand.hbm [shape: f32[8,32], index: 9, kind: output, shape index: {}]
  %s10 = sld [smem:[#allocation0]]
  $region54: #{tpu_custom_call.1} parent=0
    _
  %s12 = ssub.s32 1, %s10
  %s13 = scalar_select 0, %s12, %s10
  $region1: #{tpu_custom_call.1} parent=0
    #allocation2 [shape = 'u8[81920]{0}', space=vmem, size = 0x14000, scoped, tag = 'input window, operand 1, single buffered']
    #allocation3 [shape = 's32[1]{0}', space=sflag, size = 0x4, scoped, tag = 'scoped memory for tpu_custom_call.1']
    #allocation4 [shape = 's32[1]{0}', space=sflag, size = 0x4, scoped, tag = 'scoped memory for tpu_custom_call.1']
    #allocation5 [shape = 'u8[49152]{0}', space=vmem, size = 0xc000, scoped, tag = 'input window, operand 3, single buffered']
    #allocation6 [shape = 's32[1]{0}', space=sflag, size = 0x4, scoped, tag = 'scoped memory for tpu_custom_call.1']
    #allocation7 [shape = 'u8[4096]{0}', space=vmem, size = 0x1000, scoped, tag = 'output window, operand 0, single buffered']
    %14 = vsyncpa [#allocation3], 0
    %15 = vsyncpa [#allocation6], 0
    %16 = vsyncpa [#allocation4], 0
    // Predicated region
    $region2: #{tpu_custom_call.1} parent=1 // pred_check
      _
    $region3: #{tpu_custom_call.1} parent=1 // pred_check_branch
      %18 = sbr.rel (0) target = $region5
    $region4: #{tpu_custom_call.1} parent=1 // pred_region
      _
    $region5: #{tpu_custom_call.1} parent=1 // pred_fallthru
      _
    // Predicated region
    $region6: #{tpu_custom_call.1} parent=1 // pred_check
      _
    $region7: #{tpu_custom_call.1} parent=1 // pred_check_branch
      %20 = sbr.rel (0) target = $region9
    $region8: #{tpu_custom_call.1} parent=1 // pred_region
      %s22 = ssub.s32 2560, 2560
      %23 = vsyncadd [#allocation3], %s22
      %s24 = sshll.u32 [#allocation2], 4
      %s25 = int_to_ptr.vmem [resolvable:$true] %s24
      %30 = dma.hbm_to_vmem [thread:$0]  %s1, 2560, %s25, [#allocation3], 128, 128, 8
    $region9: #{tpu_custom_call.1} parent=1 // pred_fallthru
      _
    // Predicated region
    $region10: #{tpu_custom_call.1} parent=1 // pred_check
      _
    $region11: #{tpu_custom_call.1} parent=1 // pred_check_branch
      %32 = sbr.rel (0) target = $region13
    $region12: #{tpu_custom_call.1} parent=1 // pred_region
      _
    $region13: #{tpu_custom_call.1} parent=1 // pred_fallthru
      _
    // Predicated region
    $region14: #{tpu_custom_call.1} parent=1 // pred_check
      _
    $region15: #{tpu_custom_call.1} parent=1 // pred_check_branch
      %34 = sbr.rel (0) target = $region17
    $region16: #{tpu_custom_call.1} parent=1 // pred_region
      %s36 = ssub.s32 1536, 1536
      %37 = vsyncadd [#allocation6], %s36
      %s38 = sshll.u32 [#allocation5], 4
      %s39 = int_to_ptr.vmem [resolvable:$true] %s38
      %44 = dma.hbm_to_vmem [thread:$0]  %s3, 1536, %s39, [#allocation6], 64, 64, 4
    $region17: #{tpu_custom_call.1} parent=1 // pred_fallthru
      _
    // Predicated region
    $region18: #{tpu_custom_call.1} parent=1 // pred_check
      _
    $region19: #{tpu_custom_call.1} parent=1 // pred_check_branch
      %46 = sbr.rel (0) target = $region21
    $region20: #{tpu_custom_call.1} parent=1 // pred_region
      _
    $region21: #{tpu_custom_call.1} parent=1 // pred_fallthru
      _
    // Predicated region
    $region22: #{tpu_custom_call.1} parent=1 // pred_check
      _
    $region23: #{tpu_custom_call.1} parent=1 // pred_check_branch
      %48 = sbr.rel (0) target = $region25
    $region24: #{tpu_custom_call.1} parent=1 // pred_region
      _
    $region25: #{tpu_custom_call.1} parent=1 // pred_fallthru
      _
    // Predicated region
    $region26: #{tpu_custom_call.1} parent=1 // pred_check
      _
    $region27: #{tpu_custom_call.1} parent=1 // pred_check_branch
      %50 = sbr.rel (0) target = $region29
    $region28: #{tpu_custom_call.1} parent=1 // pred_region
      _
    $region29: #{tpu_custom_call.1} parent=1 // pred_fallthru
      _
    // Predicated region
    $region30: #{tpu_custom_call.1} parent=1 // pred_check
      _
    $region31: #{tpu_custom_call.1} parent=1 // pred_check_branch
      %52 = sbr.rel (0) target = $region33
    $region32: #{tpu_custom_call.1} parent=1 // pred_region
      _
    $region33: #{tpu_custom_call.1} parent=1 // pred_fallthru
      _
    // Predicated region
    $region34: #{tpu_custom_call.1} parent=1 // pred_check
      _
    $region35: #{tpu_custom_call.1} parent=1 // pred_check_branch
      %54 = sbr.rel (0) target = $region37
    $region36: #{tpu_custom_call.1} parent=1 // pred_region
      _
    $region37: #{tpu_custom_call.1} parent=1 // pred_fallthru
      _
    // Predicated region
    $region38: #{tpu_custom_call.1} parent=1 // pred_check
      _
    $region39: #{tpu_custom_call.1} parent=1 // pred_check_branch
      %56 = sbr.rel (0) target = $region41
    $region40: #{tpu_custom_call.1} parent=1 // pred_region
      %57 = dma.done [#allocation3], 2560
    $region41: #{tpu_custom_call.1} parent=1 // pred_fallthru
      _
    // Predicated region
    $region42: #{tpu_custom_call.1} parent=1 // pred_check
      _
    $region43: #{tpu_custom_call.1} parent=1 // pred_check_branch
      %59 = sbr.rel (0) target = $region45
    $region44: #{tpu_custom_call.1} parent=1 // pred_region
      %60 = dma.done [#allocation6], 1536
    $region45: #{tpu_custom_call.1} parent=1 // pred_fallthru
      _
    %v62 = vld [vmem:[%s0] sm:$0xff]
    %v63 = vld [vmem:[%s0 + $0x8] sm:$0xff]
    %v64 = vpack.c.bf16 %v62, %v62
    %v65 = vpack.c.bf16 %v63, %v63
    %v66 = vld [vmem:[#allocation2] sm:$0xff]
    %v67 = vld [vmem:[#allocation2 + $0x8] sm:$0xff]
    %v68 = vld [vmem:[#allocation2 + $0x10] sm:$0xff]
    %v69 = vld [vmem:[#allocation2 + $0x18] sm:$0xff]
    %v70 = vld [vmem:[#allocation2 + $0x20] sm:$0xff]
    %v71 = vld [vmem:[#allocation2 + $0x28] sm:$0xff]
    %v72 = vld [vmem:[#allocation2 + $0x30] sm:$0xff]
    %v73 = vld [vmem:[#allocation2 + $0x38] sm:$0xff]
    %v74 = vld [vmem:[#allocation2 + $0x40] sm:$0xff]
    %v75 = vld [vmem:[#allocation2 + $0x48] sm:$0xff]
    %v76 = vld [vmem:[#allocation2 + $0x50] sm:$0xff]
    %v77 = vld [vmem:[#allocation2 + $0x58] sm:$0xff]
    %v78 = vld [vmem:[#allocation2 + $0x60] sm:$0xff]
    %v79 = vld [vmem:[#allocation2 + $0x68] sm:$0xff]
    %v80 = vld [vmem:[#allocation2 + $0x70] sm:$0xff]
    %v81 = vld [vmem:[#allocation2 + $0x78] sm:$0xff]
    %v82 = vld [vmem:[#allocation2 + $0x80] sm:$0xff]
    %v83 = vld [vmem:[#allocation2 + $0x88] sm:$0xff]
    %v84 = vld [vmem:[#allocation2 + $0x90] sm:$0xff]
    %v85 = vld [vmem:[#allocation2 + $0x98] sm:$0xff]
    %v86 = vld [vmem:[%s2] sm:$0x3]
    %v88 = vlaneseq
    %v89 = vshrl.u32 %v88, 7
    %v90 = vsub.s32 0, %v89
    %v91 = vrot.slane %v86, %v90
    %v92 = vlaneseq
    %v93 = vshrl.u32 %v92, 7
    %v94 = vsub.s32 1, %v93
    %v95 = vrot.slane %v86, %v94
    %v118 = vunpack.c.l.b16 %v66
    %v119 = vunpack.c.h.b16 %v66
    %v120 = vunpack.c.l.b16 %v67
    %v121 = vunpack.c.h.b16 %v67
    %v122 = vunpack.c.l.b16 %v68
    %v123 = vunpack.c.h.b16 %v68
    %v124 = vunpack.c.l.b16 %v69
    %v125 = vunpack.c.h.b16 %v69
    %v126 = vunpack.c.l.b16 %v70
    %v127 = vunpack.c.h.b16 %v70
    %v128 = vunpack.c.l.b16 %v71
    %v129 = vunpack.c.h.b16 %v71
    %v130 = vunpack.c.l.b16 %v72
    %v131 = vunpack.c.h.b16 %v72
    %v132 = vunpack.c.l.b16 %v73
    %v133 = vunpack.c.h.b16 %v73
    %v134 = vunpack.c.l.b16 %v74
    %v135 = vunpack.c.h.b16 %v74
    %v136 = vunpack.c.l.b16 %v75
    %v137 = vunpack.c.h.b16 %v75
    %v138 = vunpack.c.l.b16 %v76
    %v139 = vunpack.c.h.b16 %v76
    %v140 = vunpack.c.l.b16 %v77
    %v141 = vunpack.c.h.b16 %v77
    %v142 = vunpack.c.l.b16 %v78
    %v143 = vunpack.c.h.b16 %v78
    %v144 = vunpack.c.l.b16 %v79
    %v145 = vunpack.c.h.b16 %v79
    %v146 = vunpack.c.l.b16 %v80
    %v147 = vunpack.c.h.b16 %v80
    %v148 = vunpack.c.l.b16 %v81
    %v149 = vunpack.c.h.b16 %v81
    %v150 = vunpack.c.l.b16 %v82
    %v151 = vunpack.c.h.b16 %v82
    %v152 = vunpack.c.l.b16 %v83
    %v153 = vunpack.c.h.b16 %v83
    %v154 = vunpack.c.l.b16 %v84
    %v155 = vunpack.c.h.b16 %v84
    %v156 = vunpack.c.l.b16 %v85
    %v157 = vunpack.c.h.b16 %v85
    %v158 = vpack.c.b16 %v120, %v118
    %v159 = vpack.c.b16 %v121, %v119
    %v160 = vpack.c.b16 %v124, %v122
    %v161 = vpack.c.b16 %v125, %v123
    %v162 = vpack.c.b16 %v128, %v126
    %v163 = vpack.c.b16 %v129, %v127
    %v164 = vpack.c.b16 %v132, %v130
    %v165 = vpack.c.b16 %v133, %v131
    %v166 = vpack.c.b16 %v136, %v134
    %v167 = vpack.c.b16 %v137, %v135
    %v168 = vpack.c.b16 %v140, %v138
    %v169 = vpack.c.b16 %v141, %v139
    %v170 = vpack.c.b16 %v144, %v142
    %v171 = vpack.c.b16 %v145, %v143
    %v172 = vpack.c.b16 %v148, %v146
    %v173 = vpack.c.b16 %v149, %v147
    %v174 = vpack.c.b16 %v152, %v150
    %v175 = vpack.c.b16 %v153, %v151
    %v176 = vpack.c.b16 %v156, %v154
    %v177 = vpack.c.b16 %v157, %v155
    %vm198 = vcmask 261120
    %v200 = vsel %vm198, %v65, 0
    %202 = vmatprep.subr.bf16.mxu0 %v159
    %203 = vmatpush1.bf16.msra.mxu0 %v158
    %204 = vmatprep.subr.bf16.mxu0 %v161
    %205 = vmatpush1.bf16.msra.mxu0 %v160
    %206 = vmatprep.subr.bf16.mxu0 %v163
    %207 = vmatpush1.bf16.msra.mxu0 %v162
    %208 = vmatprep.subr.bf16.mxu0 %v165
    %209 = vmatpush1.bf16.msra.mxu0 %v164
    %210 = vmatprep.subr.bf16.mxu0 %v167
    %211 = vmatpush1.bf16.msra.mxu0 %v166
    %212 = vmatprep.subr.bf16.mxu0 %v169
    %213 = vmatpush1.bf16.msra.mxu0 %v168
    %214 = vmatprep.subr.bf16.mxu0 %v171
    %215 = vmatpush1.bf16.msra.mxu0 %v170
    %216 = vmatprep.subr.bf16.mxu0 %v173
    %217 = vmatpush1.bf16.msra.mxu0 %v172
    %218 = vmatprep.subr.bf16.mxu0 %v175
    %219 = vmatpush1.bf16.msra.mxu0 %v174
    %220 = vmatprep.subr.bf16.mxu0 %v177
    %221 = vmatpush1.bf16.msra.mxu0 %v176
    %222 = vmatprep.subr.bf16.mxu0 0
    %223 = vmatpush1.bf16.msra.mxu0 0
    %224 = vmatprep.subr.bf16.mxu0 0
    %225 = vmatpush1.bf16.msra.mxu0 0
    %226 = vmatprep.subr.bf16.mxu0 0
    %227 = vmatpush1.bf16.msra.mxu0 0
    %228 = vmatprep.subr.bf16.mxu0 0
    %229 = vmatpush1.bf16.msra.mxu0 0
    %230 = vmatprep.subr.bf16.mxu0 0
    %231 = vmatpush1.bf16.msra.mxu0 0
    %232 = vmatprep.subr.bf16.mxu0 0
    %233 = vmatpush1.bf16.msra.mxu0 0
    %234 = vmatprep.mubr.bf16.mxu0 %v200
    %235 = vmatmul.mubr.bf16.gmra.mrb[0].mxu0 %v64
    %v236 = vpop.f32.mrb[0].mxu0
    %v237 = vadd.f32 %v91, %v236
    %v238 = vpop.f32.mrb[0].mxu0
    %v239 = vadd.f32 %v95, %v238
    %v240 = vpop.f32.mrb[0].mxu0
    %v241 = vpop.f32.mrb[0].mxu0
    %242 = vdwg.mxu0
    %v243 = vmul.f32 %v237, 0.5
    %v244 = vmul.f32 %v239, 0.5
    %v245 = vmul.f32 %v237, 0.044715
    %v246 = vmul.f32 %v239, 0.044715
    %v247 = vmul.f32 %v245, %v237
    %v248 = vmul.f32 %v246, %v239
    %v249 = vmul.f32 %v247, %v237
    %v250 = vmul.f32 %v248, %v239
    %v251 = vadd.f32 %v237, %v249
    %v252 = vadd.f32 %v239, %v250
    %v253 = vmul.f32 %v251, 0.7978846
    %v254 = vmul.f32 %v252, 0.7978846
    %v255 = vtanh.pop %v253
    %v256 = vtanh.pop %v254
    %v257 = vadd.f32 %v255, 1.0
    %v258 = vadd.f32 %v256, 1.0
    %v259 = vmul.f32 %v243, %v257
    %v260 = vmul.f32 %v244, %v258
    %v261 = vpack.c.bf16 %v259, %v259
    %v262 = vpack.c.bf16 %v260, %v260
    %v263 = vld [vmem:[#allocation5] sm:$0xf]
    %v264 = vld [vmem:[#allocation5 + $0x4] sm:$0xf]
    %v265 = vld [vmem:[#allocation5 + $0x8] sm:$0xf]
    %v266 = vld [vmem:[#allocation5 + $0xc] sm:$0xf]
    %v267 = vld [vmem:[#allocation5 + $0x10] sm:$0xf]
    %v268 = vld [vmem:[#allocation5 + $0x14] sm:$0xf]
    %v269 = vld [vmem:[#allocation5 + $0x18] sm:$0xf]
    %v270 = vld [vmem:[#allocation5 + $0x1c] sm:$0xf]
    %v271 = vld [vmem:[#allocation5 + $0x20] sm:$0xf]
    %v272 = vld [vmem:[#allocation5 + $0x24] sm:$0xf]
    %v273 = vld [vmem:[#allocation5 + $0x28] sm:$0xf]
    %v274 = vld [vmem:[#allocation5 + $0x2c] sm:$0xf]
    %v275 = vld [vmem:[#allocation5 + $0x30] sm:$0xf]
    %v276 = vld [vmem:[#allocation5 + $0x34] sm:$0xf]
    %v277 = vld [vmem:[#allocation5 + $0x38] sm:$0xf]
    %v278 = vld [vmem:[#allocation5 + $0x3c] sm:$0xf]
    %v279 = vld [vmem:[#allocation5 + $0x40] sm:$0xf]
    %v280 = vld [vmem:[#allocation5 + $0x44] sm:$0xf]
    %v281 = vld [vmem:[#allocation5 + $0x48] sm:$0xf]
    %v282 = vld [vmem:[#allocation5 + $0x4c] sm:$0xf]
    %v283 = vld [vmem:[#allocation5 + $0x50] sm:$0xf]
    %v284 = vld [vmem:[#allocation5 + $0x54] sm:$0xf]
    %v285 = vld [vmem:[#allocation5 + $0x58] sm:$0xf]
    %v286 = vld [vmem:[#allocation5 + $0x5c] sm:$0xf]
    %v287 = vld [vmem:[%s4] sm:$0x1]
    %v289 = vlaneseq
    %v290 = vshrl.u32 %v289, 7
    %v291 = vsub.s32 0, %v290
    %v292 = vrot.slane %v287, %v291
    %v318 = vunpack.c.l.b16 %v263
    %v319 = vunpack.c.l.b16 %v264
    %v320 = vunpack.c.l.b16 %v265
    %v321 = vunpack.c.l.b16 %v266
    %v322 = vunpack.c.l.b16 %v267
    %v323 = vunpack.c.l.b16 %v268
    %v324 = vunpack.c.l.b16 %v269
    %v325 = vunpack.c.l.b16 %v270
    %v326 = vunpack.c.l.b16 %v271
    %v327 = vunpack.c.l.b16 %v272
    %v328 = vunpack.c.l.b16 %v273
    %v329 = vunpack.c.l.b16 %v274
    %v330 = vunpack.c.l.b16 %v275
    %v331 = vunpack.c.l.b16 %v276
    %v332 = vunpack.c.l.b16 %v277
    %v333 = vunpack.c.l.b16 %v278
    %v334 = vunpack.c.l.b16 %v279
    %v335 = vunpack.c.l.b16 %v280
    %v336 = vunpack.c.l.b16 %v281
    %v337 = vunpack.c.l.b16 %v282
    %v338 = vunpack.c.l.b16 %v283
    %v339 = vunpack.c.l.b16 %v284
    %v340 = vunpack.c.l.b16 %v285
    %v341 = vunpack.c.l.b16 %v286
    %v342 = vpack.c.b16 %v319, %v318
    %v343 = vpack.c.b16 %v321, %v320
    %v344 = vpack.c.b16 %v323, %v322
    %v345 = vpack.c.b16 %v325, %v324
    %v346 = vpack.c.b16 %v327, %v326
    %v347 = vpack.c.b16 %v329, %v328
    %v348 = vpack.c.b16 %v331, %v330
    %v349 = vpack.c.b16 %v333, %v332
    %v350 = vpack.c.b16 %v335, %v334
    %v351 = vpack.c.b16 %v337, %v336
    %v352 = vpack.c.b16 %v339, %v338
    %v353 = vpack.c.b16 %v341, %v340
    %vm366 = vcmask 523264
    %v368 = vsel %vm366, %v262, 0
    %370 = vmatprep.subr.bf16.mxu0 0
    %371 = vmatpush1.bf16.msra.mxu0 %v342
    %372 = vmatprep.subr.bf16.mxu0 0
    %373 = vmatpush1.bf16.msra.mxu0 %v343
    %374 = vmatprep.subr.bf16.mxu0 0
    %375 = vmatpush1.bf16.msra.mxu0 %v344
    %376 = vmatprep.subr.bf16.mxu0 0
    %377 = vmatpush1.bf16.msra.mxu0 %v345
    %378 = vmatprep.subr.bf16.mxu0 0
    %379 = vmatpush1.bf16.msra.mxu0 %v346
    %380 = vmatprep.subr.bf16.mxu0 0
    %381 = vmatpush1.bf16.msra.mxu0 %v347
    %382 = vmatprep.subr.bf16.mxu0 0
    %383 = vmatpush1.bf16.msra.mxu0 %v348
    %384 = vmatprep.subr.bf16.mxu0 0
    %385 = vmatpush1.bf16.msra.mxu0 %v349
    %386 = vmatprep.subr.bf16.mxu0 0
    %387 = vmatpush1.bf16.msra.mxu0 %v350
    %388 = vmatprep.subr.bf16.mxu0 0
    %389 = vmatpush1.bf16.msra.mxu0 %v351
    %390 = vmatprep.subr.bf16.mxu0 0
    %391 = vmatpush1.bf16.msra.mxu0 %v352
    %392 = vmatprep.subr.bf16.mxu0 0
    %393 = vmatpush1.bf16.msra.mxu0 %v353
    %394 = vmatprep.subr.bf16.mxu0 0
    %395 = vmatpush1.bf16.msra.mxu0 0
    %396 = vmatprep.subr.bf16.mxu0 0
    %397 = vmatpush1.bf16.msra.mxu0 0
    %398 = vmatprep.subr.bf16.mxu0 0
    %399 = vmatpush1.bf16.msra.mxu0 0
    %400 = vmatprep.subr.bf16.mxu0 0
    %401 = vmatpush1.bf16.msra.mxu0 0
    %402 = vmatprep.mubr.bf16.mxu0 %v368
    %403 = vmatmul.mubr.bf16.gmra.mrb[0].mxu0 %v261
    %v404 = vpop.f32.mrb[0].mxu0
    %v405 = vadd.f32 %v292, %v404
    %v406 = vpop.f32.mrb[0].mxu0
    %v407 = vpop.f32.mrb[0].mxu0
    %v408 = vpop.f32.mrb[0].mxu0
    %409 = vdwg.mxu0
    %v410 = vmul.f32 %v405, 0.5
    %v411 = vmul.f32 %v405, 0.044715
    %v412 = vmul.f32 %v411, %v405
    %v413 = vmul.f32 %v412, %v405
    %v414 = vadd.f32 %v405, %v413
    %v415 = vmul.f32 %v414, 0.7978846
    %v416 = vtanh.pop %v415
    %v417 = vadd.f32 %v416, 1.0
    %v418 = vmul.f32 %v410, %v417
    %v419 = vpack.c.bf16 %v418, %v418
    %v420 = vld [vmem:[%s5] sm:$0xf]
    %v421 = vld [vmem:[%s5 + $0x4] sm:$0xf]
    %v422 = vld [vmem:[%s5 + $0x8] sm:$0xf]
    %v423 = vld [vmem:[%s5 + $0xc] sm:$0xf]
    %v424 = vld [vmem:[%s5 + $0x10] sm:$0xf]
    %v425 = vld [vmem:[%s5 + $0x14] sm:$0xf]
    %v426 = vld [vmem:[%s5 + $0x18] sm:$0xf]
    %v427 = vld [vmem:[%s5 + $0x1c] sm:$0xf]
    %v428 = vld [vmem:[%s5 + $0x20] sm:$0xf]
    %v429 = vld [vmem:[%s5 + $0x24] sm:$0xf]
    %v430 = vld [vmem:[%s5 + $0x28] sm:$0xf]
    %v431 = vld [vmem:[%s5 + $0x2c] sm:$0xf]
    %v432 = vld [vmem:[%s6] sm:$0x1]
    %v434 = vlaneseq
    %v435 = vshrl.u32 %v434, 7
    %v436 = vsub.s32 0, %v435
    %v437 = vrot.slane %v432, %v436
    %v451 = vunpack.c.l.b16 %v420
    %v452 = vunpack.c.l.b16 %v421
    %v453 = vunpack.c.l.b16 %v422
    %v454 = vunpack.c.l.b16 %v423
    %v455 = vunpack.c.l.b16 %v424
    %v456 = vunpack.c.l.b16 %v425
    %v457 = vunpack.c.l.b16 %v426
    %v458 = vunpack.c.l.b16 %v427
    %v459 = vunpack.c.l.b16 %v428
    %v460 = vunpack.c.l.b16 %v429
    %v461 = vunpack.c.l.b16 %v430
    %v462 = vunpack.c.l.b16 %v431
    %v463 = vpack.c.b16 %v452, %v451
    %v464 = vpack.c.b16 %v454, %v453
    %v465 = vpack.c.b16 %v456, %v455
    %v466 = vpack.c.b16 %v458, %v457
    %v467 = vpack.c.b16 %v460, %v459
    %v468 = vpack.c.b16 %v462, %v461
    %vm475 = vcmask 785408
    %v477 = vsel %vm475, %v419, 0
    %479 = vmatprep.subr.bf16.mxu0 0
    %480 = vmatpush1.bf16.msra.mxu0 %v463
    %481 = vmatprep.subr.bf16.mxu0 0
    %482 = vmatpush1.bf16.msra.mxu0 %v464
    %483 = vmatprep.subr.bf16.mxu0 0
    %484 = vmatpush1.bf16.msra.mxu0 %v465
    %485 = vmatprep.subr.bf16.mxu0 0
    %486 = vmatpush1.bf16.msra.mxu0 %v466
    %487 = vmatprep.subr.bf16.mxu0 0
    %488 = vmatpush1.bf16.msra.mxu0 %v467
    %489 = vmatprep.subr.bf16.mxu0 0
    %490 = vmatpush1.bf16.msra.mxu0 %v468
    %491 = vmatprep.subr.bf16.mxu0 0
    %492 = vmatpush1.bf16.msra.mxu0 0
    %493 = vmatprep.subr.bf16.mxu0 0
    %494 = vmatpush1.bf16.msra.mxu0 0
    %495 = vmatprep.subr.bf16.mxu0 0
    %496 = vmatpush1.bf16.msra.mxu0 0
    %497 = vmatprep.subr.bf16.mxu0 0
    %498 = vmatpush1.bf16.msra.mxu0 0
    %499 = vmatprep.subr.bf16.mxu0 0
    %500 = vmatpush1.bf16.msra.mxu0 0
    %501 = vmatprep.subr.bf16.mxu0 0
    %502 = vmatpush1.bf16.msra.mxu0 0
    %503 = vmatprep.subr.bf16.mxu0 0
    %504 = vmatpush1.bf16.msra.mxu0 0
    %505 = vmatprep.subr.bf16.mxu0 0
    %506 = vmatpush1.bf16.msra.mxu0 0
    %507 = vmatprep.subr.bf16.mxu0 0
    %508 = vmatpush1.bf16.msra.mxu0 0
    %509 = vmatprep.subr.bf16.mxu0 0
    %510 = vmatpush1.bf16.msra.mxu0 0
    %511 = vmatprep.mubr.bf16.mxu0 0
    %512 = vmatmul.mubr.bf16.gmra.mrb[0].mxu0 %v477
    %v513 = vpop.f32.mrb[0].mxu0
    %v514 = vadd.f32 %v437, %v513
    %v515 = vpop.f32.mrb[0].mxu0
    %v516 = vpop.f32.mrb[0].mxu0
    %v517 = vpop.f32.mrb[0].mxu0
    %518 = vdwg.mxu0
    %v519 = vmul.f32 %v514, 0.5
    %v520 = vmul.f32 %v514, 0.044715
    %v521 = vmul.f32 %v520, %v514
    %v522 = vmul.f32 %v521, %v514
    %v523 = vadd.f32 %v514, %v522
    %v524 = vmul.f32 %v523, 0.7978846
    %v525 = vtanh.pop %v524
    %v526 = vadd.f32 %v525, 1.0
    %v527 = vmul.f32 %v519, %v526
    %v528 = vpack.c.bf16 %v527, %v527
    %v529 = vld [vmem:[%s7] sm:$0xf]
    %v530 = vld [vmem:[%s7 + $0x4] sm:$0xf]
    %v531 = vld [vmem:[%s7 + $0x8] sm:$0xf]
    %v532 = vld [vmem:[%s7 + $0xc] sm:$0xf]
    %v533 = vld [vmem:[%s8] sm:$0x1]
    %v535 = vlaneseq
    %v536 = vshrl.u32 %v535, 7
    %v537 = vsub.s32 0, %v536
    %v538 = vrot.slane %v533, %v537
    %v544 = vunpack.c.l.b16 %v529
    %v545 = vunpack.c.l.b16 %v530
    %v546 = vunpack.c.l.b16 %v531
    %v547 = vunpack.c.l.b16 %v532
    %v548 = vpack.c.b16 %v545, %v544
    %v549 = vpack.c.b16 %v547, %v546
    %v553 = vsel %vm198, %v528, 0
    %555 = vmatprep.subr.bf16.mxu0 0
    %556 = vmatpush1.bf16.msra.mxu0 %v548
    %557 = vmatprep.subr.bf16.mxu0 0
    %558 = vmatpush1.bf16.msra.mxu0 %v549
    %559 = vmatprep.subr.bf16.mxu0 0
    %560 = vmatpush1.bf16.msra.mxu0 0
    %561 = vmatprep.subr.bf16.mxu0 0
    %562 = vmatpush1.bf16.msra.mxu0 0
    %563 = vmatprep.subr.bf16.mxu0 0
    %564 = vmatpush1.bf16.msra.mxu0 0
    %565 = vmatprep.subr.bf16.mxu0 0
    %566 = vmatpush1.bf16.msra.mxu0 0
    %567 = vmatprep.subr.bf16.mxu0 0
    %568 = vmatpush1.bf16.msra.mxu0 0
    %569 = vmatprep.subr.bf16.mxu0 0
    %570 = vmatpush1.bf16.msra.mxu0 0
    %571 = vmatprep.subr.bf16.mxu0 0
    %572 = vmatpush1.bf16.msra.mxu0 0
    %573 = vmatprep.subr.bf16.mxu0 0
    %574 = vmatpush1.bf16.msra.mxu0 0
    %575 = vmatprep.subr.bf16.mxu0 0
    %576 = vmatpush1.bf16.msra.mxu0 0
    %577 = vmatprep.subr.bf16.mxu0 0
    %578 = vmatpush1.bf16.msra.mxu0 0
    %579 = vmatprep.subr.bf16.mxu0 0
    %580 = vmatpush1.bf16.msra.mxu0 0
    %581 = vmatprep.subr.bf16.mxu0 0
    %582 = vmatpush1.bf16.msra.mxu0 0
    %583 = vmatprep.subr.bf16.mxu0 0
    %584 = vmatpush1.bf16.msra.mxu0 0
    %585 = vmatprep.subr.bf16.mxu0 0
    %586 = vmatpush1.bf16.msra.mxu0 0
    %587 = vmatprep.mubr.bf16.mxu0 0
    %588 = vmatmul.mubr.bf16.gmra.mrb[0].mxu0 %v553
    %v589 = vpop.f32.mrb[0].mxu0
    %v590 = vadd.f32 %v538, %v589
    %v591 = vpop.f32.mrb[0].mxu0
    %v592 = vpop.f32.mrb[0].mxu0
    %v593 = vpop.f32.mrb[0].mxu0
    %594 = vdwg.mxu0
    %v595 = vmul.f32 %v590, 0.5
    %v596 = vmul.f32 %v590, 0.044715
    %v597 = vmul.f32 %v596, %v590
    %v598 = vmul.f32 %v597, %v590
    %v599 = vadd.f32 %v590, %v598
    %v600 = vmul.f32 %v599, 0.7978846
    %v601 = vtanh.pop %v600
    %v602 = vadd.f32 %v601, 1.0
    %v603 = vmul.f32 %v595, %v602
    %v604 = vadd.f32 %v62, %v603
    %v605 = vmul.f32 %v604, %v604
    %v606 = vsel %vm198, %v605, 0.0
    %607 = vadd.xlane.f32.xlu0 %v606
    %v608 = vpop.xlane.xlu0 %607
    %v609 = vrsqrt.pop %v608
    %v610 = vmul.f32 %v604, %v609
    %611 = vst.msk [vmem:[#allocation7] sm:$0xff] %vm198, %v610
    // Predicated region
    $region46: #{tpu_custom_call.1} parent=1 // pred_check
      _
    $region47: #{tpu_custom_call.1} parent=1 // pred_check_branch
      %613 = sbr.rel (0) target = $region49
    $region48: #{tpu_custom_call.1} parent=1 // pred_region
      %s615 = ssub.s32 128, 128
      %616 = vsyncadd [#allocation4], %s615
      %s618 = sshll.u32 [#allocation7], 4
      %s619 = int_to_ptr.vmem [resolvable:$true] %s618
      %621 = dma.vmem_to_hbm [thread:$0]  %s619, 128, %s9, [#allocation4]
    $region49: #{tpu_custom_call.1} parent=1 // pred_fallthru
      _
    // Predicated region
    $region50: #{tpu_custom_call.1} parent=1 // pred_check
      _
    $region51: #{tpu_custom_call.1} parent=1 // pred_check_branch
      %623 = sbr.rel (0) target = $region53
    $region52: #{tpu_custom_call.1} parent=1 // pred_region
      %624 = dma.done [#allocation4], 128
    $region53: #{tpu_custom_call.1} parent=1 // pred_fallthru
      _
    %625 = vsyncpa [#allocation3], 1
    %626 = vsyncpa [#allocation6], 1
    %627 = vsyncpa [#allocation4], 1

</llo_original>
